<compile_context>
chip_gen: v7x
topology: tpu7x:2x2x1
jax: 0.10.0
libtpu: 0.0.40
codegen_flags: <defaults>
</compile_context>

<pallas_src>
import jax
import jax.numpy as jnp
from jax.experimental import pallas as pl
from jax.experimental.pallas import tpu as pltpu


# ----------------------------------------------------------------------------
# Fused kernel: [Linear -> BN(train) -> SiLU] * L -> Linear -> softmax + 0.01
# ----------------------------------------------------------------------------
def _make_fused_kernel(num_layers, batch):
    inv_b = 1.0 / float(batch)

    def kernel(*refs):
        # refs = (x, [w, gamma, beta] * L, w_out, b_out, o)
        x_ref = refs[0]
        o_ref = refs[-1]
        hidden_refs = refs[1:1 + 3 * num_layers]
        w_out_ref = refs[1 + 3 * num_layers]
        b_out_ref = refs[2 + 3 * num_layers]

        a = x_ref[...]                                         # f32 (B, Din_p)

        # Hidden layers unrolled at trace time; activation stays in VMEM/vregs.
        for layer in range(num_layers):
            w_ref, g_ref, be_ref = hidden_refs[3 * layer: 3 * layer + 3]

            # bf16 MXU inputs, f32 accumulation.  Hidden bias omitted: BN's
            # batch-mean subtraction cancels a per-feature constant exactly.
            z = jnp.dot(a.astype(jnp.bfloat16), w_ref[...],
                        preferred_element_type=jnp.float32)    # (B, H_p) f32

            # BatchNorm1d (training mode, biased variance) via sum / sum-sq:
            # both reductions issue immediately (no mean->diff->square chain).
            s = jnp.sum(z, axis=0, keepdims=True)              # (1, H_p)
            ss = jnp.sum(z * z, axis=0, keepdims=True)         # (1, H_p)
            mean = s * inv_b
            var = jnp.maximum(ss * inv_b - mean * mean, 0.0)   # clamp cancellation
            scale = jax.lax.rsqrt(var + 1e-5) * g_ref[...]     # (1, H_p) row math
            y = (z - mean) * scale + be_ref[...]

            # SiLU: y * sigmoid(y), sigmoid via one EUP tanh.
            a = y * (0.5 * jnp.tanh(0.5 * y) + 0.5)

        # Output layer.  Padded b_out lanes hold -1e30 (and padded w_out columns
        # are exactly zero), so the softmax ignores lane padding with no mask op.
        z = jnp.dot(a.astype(jnp.bfloat16), w_out_ref[...],
                    preferred_element_type=jnp.float32) + b_out_ref[...]
        m = jnp.max(z, axis=1, keepdims=True)
        e = jnp.exp(z - m)
        denom = jnp.sum(e, axis=1, keepdims=True)
        o_ref[...] = 0.01 + e / denom          # exact divide keeps probs tight

    return kernel


# ----------------------------------------------------------------------------
# Padding helpers (lane-dense, multiple-of-128 feature dims)
# ----------------------------------------------------------------------------
def _rup(n, m=128):
    return ((n + m - 1) // m) * m


def _full_spec(shape):
    return pl.BlockSpec(shape, lambda: tuple(0 for _ in shape))


def _pad2(a, rows, cols):
    r, c = a.shape
    return jnp.pad(a, ((0, rows - r), (0, cols - c)))


def _pad_row(v, cols):
    return jnp.pad(v, (0, cols - v.shape[0])).reshape(1, cols)


def pad_topnet_params(params, weight_dtype=jnp.bfloat16):
    """One-time preprocessing (NOT in the per-call path):
       * feature dims padded to 128-lane multiples (lane-dense MXU tiles)
       * weights stored bf16 (halves weight HBM traffic / VMEM)
       * hidden biases dropped (cancelled exactly by train-mode BN)
       * padded output-bias lanes set to -1e30 (softmax mask folded into bias)
       Returns (padded_params, output_dim)."""
    num_layers = len(params["hidden"])
    w_out, b_out = params["out"]
    Dout = w_out.shape[1]
    Din = params["hidden"][0][0].shape[0] if num_layers > 0 else w_out.shape[0]
    H = params["hidden"][0][0].shape[1] if num_layers > 0 else Din
    Din_p, H_p, Dout_p = _rup(Din), _rup(H), _rup(Dout)

    padded = {"hidden": [], "out": None}
    cur_p = Din_p
    for (w, _b, g, be) in params["hidden"]:          # _b: dead (BN cancels it)
        padded["hidden"].append((
            _pad2(w, cur_p, H_p).astype(weight_dtype),
            _pad_row(g, H_p).astype(jnp.float32),
            _pad_row(be, H_p).astype(jnp.float32),
        ))
        cur_p = H_p
    w_out_p = _pad2(w_out, cur_p, Dout_p).astype(weight_dtype)
    b_out_row = jnp.full((1, Dout_p), -1e30, jnp.float32)
    b_out_row = b_out_row.at[0, :Dout].set(b_out.astype(jnp.float32))
    padded["out"] = (w_out_p, b_out_row)
    return padded, Dout


# ----------------------------------------------------------------------------
# Forward wrapper: only x is padded per call; single fused pallas_call.
# ----------------------------------------------------------------------------
def topnet_forward(padded, x, out_dim):
    B, Din = x.shape
    assert B % 8 == 0, "batch must be a multiple of 8 (f32 sublane alignment)"
    num_layers = len(padded["hidden"])
    w_out_p, b_out_row = padded["out"]
    Din_p = padded["hidden"][0][0].shape[0] if num_layers > 0 else w_out_p.shape[0]
    H_p = padded["hidden"][0][0].shape[1] if num_layers > 0 else Din_p
    Dout_p = w_out_p.shape[1]

    x_p = jnp.pad(x, ((0, 0), (0, Din_p - Din)))

    args = [x_p]
    for (w, g, be) in padded["hidden"]:
        args += [w, g, be]
    args += [w_out_p, b_out_row]
    in_specs = [_full_spec(a.shape) for a in args]

    # Advisory scheduling hints + explicit scoped-VMEM budget.
    in_bytes = sum(int(a.size) * a.dtype.itemsize for a in args)
    out_bytes = B * Dout_p * 4
    flops = 0
    for (w, _, _) in padded["hidden"]:
        flops += 2 * B * w.shape[0] * w.shape[1]
    flops += 2 * B * w_out_p.shape[0] * w_out_p.shape[1]
    transcendentals = num_layers * B * H_p + B * Dout_p
    vmem_limit = min(max(2 * (in_bytes + out_bytes) + (2 << 20), 16 << 20), 64 << 20)

    out_pad = pl.pallas_call(
        _make_fused_kernel(num_layers, B),
        out_shape=jax.ShapeDtypeStruct((B, Dout_p), jnp.float32),
        in_specs=in_specs,
        out_specs=_full_spec((B, Dout_p)),          # lane-dense (B, 128k) store
        compiler_params=pltpu.CompilerParams(vmem_limit_bytes=vmem_limit),
        cost_estimate=pl.CostEstimate(flops=flops,
                                      transcendentals=transcendentals,
                                      bytes_accessed=in_bytes + out_bytes),
    )(*args)
    return out_pad[:, :out_dim]


# ----------------------------------------------------------------------------
# Parameter construction (xavier-normal weights, zero biases, BN gamma=1/beta=0
# — matching TopNet.__init__ semantics).
# ----------------------------------------------------------------------------
def init_topnet_params(key, input_dim, num_layers, neurons_per_layer, output_dim):
    params = {"hidden": [], "out": None}
    cur = input_dim
    for _ in range(num_layers):
        key, wk = jax.random.split(key)
        std = (2.0 / (cur + neurons_per_layer)) ** 0.5          # xavier_normal_
        w = std * jax.random.normal(wk, (cur, neurons_per_layer), jnp.float32)
        b = jnp.zeros((neurons_per_layer,), jnp.float32)
        gamma = jnp.ones((neurons_per_layer,), jnp.float32)
        beta = jnp.zeros((neurons_per_layer,), jnp.float32)
        params["hidden"].append((w, b, gamma, beta))
        cur = neurons_per_layer
    key, wk = jax.random.split(key)
    std = (1.0 / cur) ** 0.5
    w_out = std * jax.random.normal(wk, (cur, output_dim), jnp.float32)
    b_out = jnp.zeros((output_dim,), jnp.float32)
    params["out"] = (w_out, b_out)
    return params


# ----------------------------------------------------------------------------
# Pure-JAX f32 reference (train-mode BN, exact sigmoid) for sanity checking.
# ----------------------------------------------------------------------------
def topnet_reference(params, x):
    for (w, b, gamma, beta) in params["hidden"]:
        z = x @ w + b
        mean = jnp.mean(z, axis=0, keepdims=True)
        var = jnp.mean((z - mean) ** 2, axis=0, keepdims=True)
        y = (z - mean) / jnp.sqrt(var + 1e-5) * gamma + beta
        x = y * jax.nn.sigmoid(y)
    w_out, b_out = params["out"]
    z = x @ w_out + b_out
    return 0.01 + jax.nn.softmax(z, axis=1)


if __name__ == "__main__":
    batch = 8
    input_dim = 16
    num_layers = 2
    neurons_per_layer = 32
    output_dim = 4

    key = jax.random.PRNGKey(0)
    key, xk = jax.random.split(key)
    x = jax.random.normal(xk, (batch, input_dim), jnp.float32)

    params = init_topnet_params(key, input_dim, num_layers,
                                neurons_per_layer, output_dim)
    padded_params, out_dim = pad_topnet_params(params)   # one-time prep

    fwd = jax.jit(topnet_forward, static_argnums=2)
    rho = jax.block_until_ready(fwd(padded_params, x, out_dim))
    rho_ref = topnet_reference(params, x)

    assert rho.shape == (batch, output_dim)
    # Only remaining approximation is bf16 MXU inputs (weights + activation
    # casts); the sigmoid/softmax math is exact.  Observed error on softmax
    # outputs is ~1e-3; tolerance below is headroom for that mixed precision.
    max_diff = float(jnp.max(jnp.abs(rho - rho_ref)))
    assert jnp.allclose(rho, rho_ref, atol=3e-2, rtol=3e-2), \
        f"mismatch vs reference, max abs diff = {max_diff}"

    print("KERNEL_OK")
</pallas_src>

<mosaic_0001>
module attributes {stable_mosaic.version = 11 : i64} {
  func.func @kernel(%arg0: memref<8x128xf32, #tpu.memory_space<vmem>>, %arg1: memref<128x128xbf16, #tpu.memory_space<vmem>>, %arg2: memref<1x128xf32, #tpu.memory_space<vmem>>, %arg3: memref<1x128xf32, #tpu.memory_space<vmem>>, %arg4: memref<128x128xbf16, #tpu.memory_space<vmem>>, %arg5: memref<1x128xf32, #tpu.memory_space<vmem>>, %arg6: memref<1x128xf32, #tpu.memory_space<vmem>>, %arg7: memref<128x128xbf16, #tpu.memory_space<vmem>>, %arg8: memref<1x128xf32, #tpu.memory_space<vmem>>, %arg9: memref<8x128xf32, #tpu.memory_space<vmem>>) attributes {dimension_semantics = [], scalar_prefetch = 0 : i64, scratch_operands = 0 : i64, tpu.core_type = #tpu.core_type<tc>} {
    %c0 = arith.constant 0 : index
    %c0_0 = arith.constant 0 : index
    %0 = vector.load %arg0[%c0, %c0_0] : memref<8x128xf32, #tpu.memory_space<vmem>>, vector<8x128xf32>
    %1 = arith.truncf %0 : vector<8x128xf32> to vector<8x128xbf16>
    %c0_1 = arith.constant 0 : index
    %c0_2 = arith.constant 0 : index
    %2 = vector.load %arg1[%c0_1, %c0_2] : memref<128x128xbf16, #tpu.memory_space<vmem>>, vector<128x128xbf16>
    %cst = arith.constant dense<0.000000e+00> : vector<8x128xf32>
    %3 = tpu.matmul %1, %2, %cst {dimension_numbers = #tpu.dot_dimension_numbers<[1], [0], [0], [1], [0, 0, 1, 1], [], []>} : vector<8x128xbf16>, vector<128x128xbf16>, vector<8x128xf32> -> vector<8x128xf32>
    %cst_3 = arith.constant dense<0.000000e+00> : vector<128xf32>
    %4 = vector.multi_reduction <add>, %3, %cst_3 [0] : vector<8x128xf32> to vector<128xf32>
    %5 = vector.shape_cast %4 : vector<128xf32> to vector<1x128xf32>
    %6 = arith.mulf %3, %3 : vector<8x128xf32>
    %cst_4 = arith.constant dense<0.000000e+00> : vector<128xf32>
    %7 = vector.multi_reduction <add>, %6, %cst_4 [0] : vector<8x128xf32> to vector<128xf32>
    %8 = vector.shape_cast %7 : vector<128xf32> to vector<1x128xf32>
    %cst_5 = arith.constant 1.250000e-01 : f32
    %9 = vector.broadcast %cst_5 : f32 to vector<1x128xf32>
    %10 = arith.mulf %5, %9 : vector<1x128xf32>
    %cst_6 = arith.constant 1.250000e-01 : f32
    %11 = vector.broadcast %cst_6 : f32 to vector<1x128xf32>
    %12 = arith.mulf %8, %11 : vector<1x128xf32>
    %13 = arith.mulf %10, %10 : vector<1x128xf32>
    %14 = arith.subf %12, %13 : vector<1x128xf32>
    %cst_7 = arith.constant 0.000000e+00 : f32
    %15 = vector.broadcast %cst_7 : f32 to vector<1x128xf32>
    %16 = arith.maximumf %14, %15 : vector<1x128xf32>
    %cst_8 = arith.constant 9.99999974E-6 : f32
    %17 = vector.broadcast %cst_8 : f32 to vector<1x128xf32>
    %18 = arith.addf %16, %17 : vector<1x128xf32>
    %19 = math.rsqrt %18 : vector<1x128xf32>
    %c0_9 = arith.constant 0 : index
    %c0_10 = arith.constant 0 : index
    %20 = vector.load %arg2[%c0_9, %c0_10] : memref<1x128xf32, #tpu.memory_space<vmem>>, vector<1x128xf32>
    %21 = arith.mulf %19, %20 : vector<1x128xf32>
    %22 = vector.broadcast %10 : vector<1x128xf32> to vector<8x128xf32>
    %23 = arith.subf %3, %22 : vector<8x128xf32>
    %24 = vector.broadcast %21 : vector<1x128xf32> to vector<8x128xf32>
    %25 = arith.mulf %23, %24 : vector<8x128xf32>
    %c0_11 = arith.constant 0 : index
    %c0_12 = arith.constant 0 : index
    %26 = vector.load %arg3[%c0_11, %c0_12] : memref<1x128xf32, #tpu.memory_space<vmem>>, vector<1x128xf32>
    %27 = vector.broadcast %26 : vector<1x128xf32> to vector<8x128xf32>
    %28 = arith.addf %25, %27 : vector<8x128xf32>
    %cst_13 = arith.constant 5.000000e-01 : f32
    %29 = vector.broadcast %cst_13 : f32 to vector<8x128xf32>
    %30 = arith.mulf %29, %28 : vector<8x128xf32>
    %31 = math.tanh %30 : vector<8x128xf32>
    %cst_14 = arith.constant 5.000000e-01 : f32
    %32 = vector.broadcast %cst_14 : f32 to vector<8x128xf32>
    %33 = arith.mulf %32, %31 : vector<8x128xf32>
    %cst_15 = arith.constant 5.000000e-01 : f32
    %34 = vector.broadcast %cst_15 : f32 to vector<8x128xf32>
    %35 = arith.addf %33, %34 : vector<8x128xf32>
    %36 = arith.mulf %28, %35 : vector<8x128xf32>
    %37 = arith.truncf %36 : vector<8x128xf32> to vector<8x128xbf16>
    %c0_16 = arith.constant 0 : index
    %c0_17 = arith.constant 0 : index
    %38 = vector.load %arg4[%c0_16, %c0_17] : memref<128x128xbf16, #tpu.memory_space<vmem>>, vector<128x128xbf16>
    %cst_18 = arith.constant dense<0.000000e+00> : vector<8x128xf32>
    %39 = tpu.matmul %37, %38, %cst_18 {dimension_numbers = #tpu.dot_dimension_numbers<[1], [0], [0], [1], [0, 0, 1, 1], [], []>} : vector<8x128xbf16>, vector<128x128xbf16>, vector<8x128xf32> -> vector<8x128xf32>
    %cst_19 = arith.constant dense<0.000000e+00> : vector<128xf32>
    %40 = vector.multi_reduction <add>, %39, %cst_19 [0] : vector<8x128xf32> to vector<128xf32>
    %41 = vector.shape_cast %40 : vector<128xf32> to vector<1x128xf32>
    %42 = arith.mulf %39, %39 : vector<8x128xf32>
    %cst_20 = arith.constant dense<0.000000e+00> : vector<128xf32>
    %43 = vector.multi_reduction <add>, %42, %cst_20 [0] : vector<8x128xf32> to vector<128xf32>
    %44 = vector.shape_cast %43 : vector<128xf32> to vector<1x128xf32>
    %cst_21 = arith.constant 1.250000e-01 : f32
    %45 = vector.broadcast %cst_21 : f32 to vector<1x128xf32>
    %46 = arith.mulf %41, %45 : vector<1x128xf32>
    %cst_22 = arith.constant 1.250000e-01 : f32
    %47 = vector.broadcast %cst_22 : f32 to vector<1x128xf32>
    %48 = arith.mulf %44, %47 : vector<1x128xf32>
    %49 = arith.mulf %46, %46 : vector<1x128xf32>
    %50 = arith.subf %48, %49 : vector<1x128xf32>
    %cst_23 = arith.constant 0.000000e+00 : f32
    %51 = vector.broadcast %cst_23 : f32 to vector<1x128xf32>
    %52 = arith.maximumf %50, %51 : vector<1x128xf32>
    %cst_24 = arith.constant 9.99999974E-6 : f32
    %53 = vector.broadcast %cst_24 : f32 to vector<1x128xf32>
    %54 = arith.addf %52, %53 : vector<1x128xf32>
    %55 = math.rsqrt %54 : vector<1x128xf32>
    %c0_25 = arith.constant 0 : index
    %c0_26 = arith.constant 0 : index
    %56 = vector.load %arg5[%c0_25, %c0_26] : memref<1x128xf32, #tpu.memory_space<vmem>>, vector<1x128xf32>
    %57 = arith.mulf %55, %56 : vector<1x128xf32>
    %58 = vector.broadcast %46 : vector<1x128xf32> to vector<8x128xf32>
    %59 = arith.subf %39, %58 : vector<8x128xf32>
    %60 = vector.broadcast %57 : vector<1x128xf32> to vector<8x128xf32>
    %61 = arith.mulf %59, %60 : vector<8x128xf32>
    %c0_27 = arith.constant 0 : index
    %c0_28 = arith.constant 0 : index
    %62 = vector.load %arg6[%c0_27, %c0_28] : memref<1x128xf32, #tpu.memory_space<vmem>>, vector<1x128xf32>
    %63 = vector.broadcast %62 : vector<1x128xf32> to vector<8x128xf32>
    %64 = arith.addf %61, %63 : vector<8x128xf32>
    %cst_29 = arith.constant 5.000000e-01 : f32
    %65 = vector.broadcast %cst_29 : f32 to vector<8x128xf32>
    %66 = arith.mulf %65, %64 : vector<8x128xf32>
    %67 = math.tanh %66 : vector<8x128xf32>
    %cst_30 = arith.constant 5.000000e-01 : f32
    %68 = vector.broadcast %cst_30 : f32 to vector<8x128xf32>
    %69 = arith.mulf %68, %67 : vector<8x128xf32>
    %cst_31 = arith.constant 5.000000e-01 : f32
    %70 = vector.broadcast %cst_31 : f32 to vector<8x128xf32>
    %71 = arith.addf %69, %70 : vector<8x128xf32>
    %72 = arith.mulf %64, %71 : vector<8x128xf32>
    %73 = arith.truncf %72 : vector<8x128xf32> to vector<8x128xbf16>
    %c0_32 = arith.constant 0 : index
    %c0_33 = arith.constant 0 : index
    %74 = vector.load %arg7[%c0_32, %c0_33] : memref<128x128xbf16, #tpu.memory_space<vmem>>, vector<128x128xbf16>
    %cst_34 = arith.constant dense<0.000000e+00> : vector<8x128xf32>
    %75 = tpu.matmul %73, %74, %cst_34 {dimension_numbers = #tpu.dot_dimension_numbers<[1], [0], [0], [1], [0, 0, 1, 1], [], []>} : vector<8x128xbf16>, vector<128x128xbf16>, vector<8x128xf32> -> vector<8x128xf32>
    %c0_35 = arith.constant 0 : index
    %c0_36 = arith.constant 0 : index
    %76 = vector.load %arg8[%c0_35, %c0_36] : memref<1x128xf32, #tpu.memory_space<vmem>>, vector<1x128xf32>
    %77 = vector.broadcast %76 : vector<1x128xf32> to vector<8x128xf32>
    %78 = arith.addf %75, %77 : vector<8x128xf32>
    %cst_37 = arith.constant dense<0xFF800000> : vector<8xf32>
    %79 = vector.multi_reduction <maximumf>, %78, %cst_37 [1] : vector<8x128xf32> to vector<8xf32>
    %80 = vector.shape_cast %79 : vector<8xf32> to vector<8x1xf32>
    %81 = vector.broadcast %80 : vector<8x1xf32> to vector<8x128xf32>
    %82 = arith.subf %78, %81 : vector<8x128xf32>
    %83 = math.exp %82 : vector<8x128xf32>
    %cst_38 = arith.constant dense<0.000000e+00> : vector<8xf32>
    %84 = vector.multi_reduction <add>, %83, %cst_38 [1] : vector<8x128xf32> to vector<8xf32>
    %85 = vector.shape_cast %84 : vector<8xf32> to vector<8x1xf32>
    %86 = vector.broadcast %85 : vector<8x1xf32> to vector<8x128xf32>
    %87 = arith.divf %83, %86 : vector<8x128xf32>
    %cst_39 = arith.constant 0.00999999977 : f32
    %88 = vector.broadcast %cst_39 : f32 to vector<8x128xf32>
    %89 = arith.addf %88, %87 : vector<8x128xf32>
    %c0_40 = arith.constant 0 : index
    %c0_41 = arith.constant 0 : index
    %90 = vector.load %arg9[%c0_40, %c0_41] : memref<8x128xf32, #tpu.memory_space<vmem>>, vector<8x128xf32>
    tpu.vector_store %arg9[%c0_40, %c0_41], %89 {strides = array<i32>} : memref<8x128xf32, #tpu.memory_space<vmem>>, vector<8x128xf32>,
    return
  }
}

</mosaic_0001>

<llo_original>
// kernel: topnet_forward.1
$region0: #{topnet_forward.1}
  #allocation0 [shape = 'u32[]', space=smem, size = 0x4, offset = 0x4, fixed_abs, tag = 'smem constant byte address 0x4 - core index']
  #allocation1 [shape = 'u32[144,128]{1,0:T(1,128)}', space=vmem, size = 0x12000, scoped, tag = 'internal scratch']
  %s0 = inlined_call_operand.vmem [shape: f32[8,128], index: 0, kind: input, shape index: {}]
  %s1 = inlined_call_operand.hbm [shape: bf16[128,128], index: 1, kind: input, shape index: {}]
  %s2 = inlined_call_operand.vmem [shape: f32[1,128], index: 2, kind: input, shape index: {}]
  %s3 = inlined_call_operand.vmem [shape: f32[1,128], index: 3, kind: input, shape index: {}]
  %s4 = inlined_call_operand.hbm [shape: bf16[128,128], index: 4, kind: input, shape index: {}]
  %s5 = inlined_call_operand.vmem [shape: f32[1,128], index: 5, kind: input, shape index: {}]
  %s6 = inlined_call_operand.vmem [shape: f32[1,128], index: 6, kind: input, shape index: {}]
  %s7 = inlined_call_operand.hbm [shape: bf16[128,128], index: 7, kind: input, shape index: {}]
  %s8 = inlined_call_operand.vmem [shape: f32[1,128], index: 8, kind: input, shape index: {}]
  %s9 = inlined_call_operand.vmem [shape: f32[8,128], index: 9, kind: output, shape index: {}]
  %s10 = sld [smem:[#allocation0]]
  $region58: #{topnet_forward.1} parent=0
    _
  %s12 = ssub.s32 1, %s10
  %s13 = scalar_select 0, %s12, %s10
  $region1: #{topnet_forward.1} parent=0
    #allocation2 [shape = 'u8[32768]{0}', space=vmem, size = 0x8000, scoped, tag = 'input window, operand 1, single buffered']
    #allocation3 [shape = 's32[1]{0}', space=sflag, size = 0x4, scoped, tag = 'scoped memory for topnet_forward.1']
    #allocation4 [shape = 'u8[32768]{0}', space=vmem, size = 0x8000, scoped, tag = 'input window, operand 4, single buffered']
    #allocation5 [shape = 's32[1]{0}', space=sflag, size = 0x4, scoped, tag = 'scoped memory for topnet_forward.1']
    #allocation6 [shape = 'u8[32768]{0}', space=vmem, size = 0x8000, scoped, tag = 'input window, operand 7, single buffered']
    %14 = vsyncpa [#allocation3], 0
    %15 = vsyncpa [#allocation5], 0
    // Predicated region
    $region2: #{topnet_forward.1} parent=1 // pred_check
      _
    $region3: #{topnet_forward.1} parent=1 // pred_check_branch
      %17 = sbr.rel (0) target = $region5
    $region4: #{topnet_forward.1} parent=1 // pred_region
      _
    $region5: #{topnet_forward.1} parent=1 // pred_fallthru
      _
    // Predicated region
    $region6: #{topnet_forward.1} parent=1 // pred_check
      _
    $region7: #{topnet_forward.1} parent=1 // pred_check_branch
      %19 = sbr.rel (0) target = $region9
    $region8: #{topnet_forward.1} parent=1 // pred_region
      %s21 = ssub.s32 1024, 1024
      %22 = vsyncadd [#allocation3], %s21
      %s23 = sshll.u32 [#allocation2], 4
      %s24 = int_to_ptr.vmem [resolvable:$true] %s23
      %29 = dma.hbm_to_vmem [thread:$0]  %s1, 1024, %s24, [#allocation3], 64, 64, 4
    $region9: #{topnet_forward.1} parent=1 // pred_fallthru
      _
    // Predicated region
    $region10: #{topnet_forward.1} parent=1 // pred_check
      _
    $region11: #{topnet_forward.1} parent=1 // pred_check_branch
      %31 = sbr.rel (0) target = $region13
    $region12: #{topnet_forward.1} parent=1 // pred_region
      _
    $region13: #{topnet_forward.1} parent=1 // pred_fallthru
      _
    // Predicated region
    $region14: #{topnet_forward.1} parent=1 // pred_check
      _
    $region15: #{topnet_forward.1} parent=1 // pred_check_branch
      %33 = sbr.rel (0) target = $region17
    $region16: #{topnet_forward.1} parent=1 // pred_region
      _
    $region17: #{topnet_forward.1} parent=1 // pred_fallthru
      _
    // Predicated region
    $region18: #{topnet_forward.1} parent=1 // pred_check
      _
    $region19: #{topnet_forward.1} parent=1 // pred_check_branch
      %35 = sbr.rel (0) target = $region21
    $region20: #{topnet_forward.1} parent=1 // pred_region
      %s37 = ssub.s32 1024, 1024
      %38 = vsyncadd [#allocation5], %s37
      %s39 = sshll.u32 [#allocation4], 4
      %s40 = int_to_ptr.vmem [resolvable:$true] %s39
      %45 = dma.hbm_to_vmem [thread:$0]  %s4, 1024, %s40, [#allocation5], 64, 64, 4
    $region21: #{topnet_forward.1} parent=1 // pred_fallthru
      _
    // Predicated region
    $region22: #{topnet_forward.1} parent=1 // pred_check
      _
    $region23: #{topnet_forward.1} parent=1 // pred_check_branch
      %47 = sbr.rel (0) target = $region25
    $region24: #{topnet_forward.1} parent=1 // pred_region
      _
    $region25: #{topnet_forward.1} parent=1 // pred_fallthru
      _
    // Predicated region
    $region26: #{topnet_forward.1} parent=1 // pred_check
      _
    $region27: #{topnet_forward.1} parent=1 // pred_check_branch
      %49 = sbr.rel (0) target = $region29
    $region28: #{topnet_forward.1} parent=1 // pred_region
      _
    $region29: #{topnet_forward.1} parent=1 // pred_fallthru
      _
    // Predicated region
    $region30: #{topnet_forward.1} parent=1 // pred_check
      _
    $region31: #{topnet_forward.1} parent=1 // pred_check_branch
      %51 = sbr.rel (0) target = $region33
    $region32: #{topnet_forward.1} parent=1 // pred_region
      %s53 = ssub.s32 1024, 1024
      %54 = vsyncadd [#allocation5], %s53
      %s55 = sshll.u32 [#allocation6], 4
      %s56 = int_to_ptr.vmem [resolvable:$true] %s55
      %61 = dma.hbm_to_vmem [thread:$0]  %s7, 1024, %s56, [#allocation5], 64, 64, 4
    $region33: #{topnet_forward.1} parent=1 // pred_fallthru
      _
    // Predicated region
    $region34: #{topnet_forward.1} parent=1 // pred_check
      _
    $region35: #{topnet_forward.1} parent=1 // pred_check_branch
      %63 = sbr.rel (0) target = $region37
    $region36: #{topnet_forward.1} parent=1 // pred_region
      _
    $region37: #{topnet_forward.1} parent=1 // pred_fallthru
      _
    // Predicated region
    $region38: #{topnet_forward.1} parent=1 // pred_check
      _
    $region39: #{topnet_forward.1} parent=1 // pred_check_branch
      %65 = sbr.rel (0) target = $region41
    $region40: #{topnet_forward.1} parent=1 // pred_region
      %66 = dma.done [#allocation3], 1024
    $region41: #{topnet_forward.1} parent=1 // pred_fallthru
      _
    // Predicated region
    $region42: #{topnet_forward.1} parent=1 // pred_check
      _
    $region43: #{topnet_forward.1} parent=1 // pred_check_branch
      %68 = sbr.rel (0) target = $region45
    $region44: #{topnet_forward.1} parent=1 // pred_region
      %69 = dma.done [#allocation5], 1024
    $region45: #{topnet_forward.1} parent=1 // pred_fallthru
      _
    // Predicated region
    $region46: #{topnet_forward.1} parent=1 // pred_check
      _
    $region47: #{topnet_forward.1} parent=1 // pred_check_branch
      %71 = sbr.rel (0) target = $region49
    $region48: #{topnet_forward.1} parent=1 // pred_region
      %72 = dma.done [#allocation5], 1024
    $region49: #{topnet_forward.1} parent=1 // pred_fallthru
      _
    %v74 = vld [vmem:[%s0] sm:$0xff]
    %v75 = vpack.c.bf16 %v74, %v74
    %v76 = vld [vmem:[#allocation2] sm:$0xf]
    %v77 = vld [vmem:[#allocation2 + $0x4] sm:$0xf]
    %v78 = vld [vmem:[#allocation2 + $0x8] sm:$0xf]
    %v79 = vld [vmem:[#allocation2 + $0xc] sm:$0xf]
    %v80 = vld [vmem:[#allocation2 + $0x10] sm:$0xf]
    %v81 = vld [vmem:[#allocation2 + $0x14] sm:$0xf]
    %v82 = vld [vmem:[#allocation2 + $0x18] sm:$0xf]
    %v83 = vld [vmem:[#allocation2 + $0x1c] sm:$0xf]
    %v84 = vld [vmem:[#allocation2 + $0x20] sm:$0xf]
    %v85 = vld [vmem:[#allocation2 + $0x24] sm:$0xf]
    %v86 = vld [vmem:[#allocation2 + $0x28] sm:$0xf]
    %v87 = vld [vmem:[#allocation2 + $0x2c] sm:$0xf]
    %v88 = vld [vmem:[#allocation2 + $0x30] sm:$0xf]
    %v89 = vld [vmem:[#allocation2 + $0x34] sm:$0xf]
    %v90 = vld [vmem:[#allocation2 + $0x38] sm:$0xf]
    %v91 = vld [vmem:[#allocation2 + $0x3c] sm:$0xf]
    %v108 = vunpack.c.l.b16 %v76
    %v109 = vunpack.c.l.b16 %v77
    %v110 = vunpack.c.l.b16 %v78
    %v111 = vunpack.c.l.b16 %v79
    %v112 = vunpack.c.l.b16 %v80
    %v113 = vunpack.c.l.b16 %v81
    %v114 = vunpack.c.l.b16 %v82
    %v115 = vunpack.c.l.b16 %v83
    %v116 = vunpack.c.l.b16 %v84
    %v117 = vunpack.c.l.b16 %v85
    %v118 = vunpack.c.l.b16 %v86
    %v119 = vunpack.c.l.b16 %v87
    %v120 = vunpack.c.l.b16 %v88
    %v121 = vunpack.c.l.b16 %v89
    %v122 = vunpack.c.l.b16 %v90
    %v123 = vunpack.c.l.b16 %v91
    %v124 = vpack.c.b16 %v109, %v108
    %v125 = vpack.c.b16 %v111, %v110
    %v126 = vpack.c.b16 %v113, %v112
    %v127 = vpack.c.b16 %v115, %v114
    %v128 = vpack.c.b16 %v117, %v116
    %v129 = vpack.c.b16 %v119, %v118
    %v130 = vpack.c.b16 %v121, %v120
    %v131 = vpack.c.b16 %v123, %v122
    %140 = vmatprep.subr.bf16.mxu0 0
    %141 = vmatpush1.bf16.msra.mxu0 %v124
    %142 = vmatprep.subr.bf16.mxu0 0
    %143 = vmatpush1.bf16.msra.mxu0 %v125
    %144 = vmatprep.subr.bf16.mxu0 0
    %145 = vmatpush1.bf16.msra.mxu0 %v126
    %146 = vmatprep.subr.bf16.mxu0 0
    %147 = vmatpush1.bf16.msra.mxu0 %v127
    %148 = vmatprep.subr.bf16.mxu0 0
    %149 = vmatpush1.bf16.msra.mxu0 %v128
    %150 = vmatprep.subr.bf16.mxu0 0
    %151 = vmatpush1.bf16.msra.mxu0 %v129
    %152 = vmatprep.subr.bf16.mxu0 0
    %153 = vmatpush1.bf16.msra.mxu0 %v130
    %154 = vmatprep.subr.bf16.mxu0 0
    %155 = vmatpush1.bf16.msra.mxu0 %v131
    %156 = vmatprep.subr.bf16.mxu0 0
    %157 = vmatpush1.bf16.msra.mxu0 0
    %158 = vmatprep.subr.bf16.mxu0 0
    %159 = vmatpush1.bf16.msra.mxu0 0
    %160 = vmatprep.subr.bf16.mxu0 0
    %161 = vmatpush1.bf16.msra.mxu0 0
    %162 = vmatprep.subr.bf16.mxu0 0
    %163 = vmatpush1.bf16.msra.mxu0 0
    %164 = vmatprep.subr.bf16.mxu0 0
    %165 = vmatpush1.bf16.msra.mxu0 0
    %166 = vmatprep.subr.bf16.mxu0 0
    %167 = vmatpush1.bf16.msra.mxu0 0
    %168 = vmatprep.subr.bf16.mxu0 0
    %169 = vmatpush1.bf16.msra.mxu0 0
    %170 = vmatprep.subr.bf16.mxu0 0
    %171 = vmatpush1.bf16.msra.mxu0 0
    %172 = vmatprep.mubr.bf16.mxu0 0
    %173 = vmatmul.mubr.bf16.gmra.mrb[0].mxu0 %v75
    %v174 = vpop.f32.mrb[0].mxu0
    %v175 = vadd.f32 0.0, %v174
    %v176 = vpop.f32.mrb[0].mxu0
    %v177 = vpop.f32.mrb[0].mxu0
    %v178 = vpop.f32.mrb[0].mxu0
    %179 = vdwg.mxu0
    %v180 = vrot.slane %v175, 4
    %v181 = vadd.f32 %v175, %v180
    %v182 = vrot.slane %v181, 2
    %v183 = vadd.f32 %v181, %v182
    %v184 = vrot.slane %v183, 1
    %v185 = vadd.f32 %v183, %v184
    %v186 = vmul.f32 %v175, %v175
    %v187 = vrot.slane %v186, 4
    %v188 = vadd.f32 %v186, %v187
    %v189 = vrot.slane %v188, 2
    %v190 = vadd.f32 %v188, %v189
    %v191 = vrot.slane %v190, 1
    %v192 = vadd.f32 %v190, %v191
    %v193 = vmul.f32 %v185, 0.125
    %v194 = vmul.f32 %v192, 0.125
    %v195 = vmul.f32 %v193, %v193
    %v196 = vsub.f32 %v194, %v195
    %v197 = vmax.f32 %v196, 0.0
    %v198 = vadd.f32 %v197, 1e-05
    %v199 = vrsqrt.pop %v198
    %v200 = vld [vmem:[%s2] sm:$0x1]
    %v201 = vmul.f32 %v199, %v200
    %v202 = vsub.f32 %v175, %v193
    %v203 = vlaneseq
    %v204 = vshrl.u32 %v203, 7
    %v205 = vsub.s32 0, %v204
    %v206 = vrot.slane %v201, %v205
    %v207 = vmul.f32 %v202, %v206
    %v208 = vld [vmem:[%s3] sm:$0x1]
    %v210 = vlaneseq
    %v211 = vshrl.u32 %v210, 7
    %v212 = vsub.s32 0, %v211
    %v213 = vrot.slane %v208, %v212
    %v215 = vadd.f32 %v207, %v213
    %v216 = vmul.f32 %v215, 0.5
    %v217 = vtanh.pop %v216
    %v218 = vmul.f32 %v217, 0.5
    %v219 = vadd.f32 %v218, 0.5
    %v220 = vmul.f32 %v215, %v219
    %v221 = vpack.c.bf16 %v220, %v220
    %v222 = vld [vmem:[#allocation4] sm:$0xf]
    %v223 = vld [vmem:[#allocation4 + $0x4] sm:$0xf]
    %v224 = vld [vmem:[#allocation4 + $0x8] sm:$0xf]
    %v225 = vld [vmem:[#allocation4 + $0xc] sm:$0xf]
    %v226 = vld [vmem:[#allocation4 + $0x10] sm:$0xf]
    %v227 = vld [vmem:[#allocation4 + $0x14] sm:$0xf]
    %v228 = vld [vmem:[#allocation4 + $0x18] sm:$0xf]
    %v229 = vld [vmem:[#allocation4 + $0x1c] sm:$0xf]
    %v230 = vld [vmem:[#allocation4 + $0x20] sm:$0xf]
    %v231 = vld [vmem:[#allocation4 + $0x24] sm:$0xf]
    %v232 = vld [vmem:[#allocation4 + $0x28] sm:$0xf]
    %v233 = vld [vmem:[#allocation4 + $0x2c] sm:$0xf]
    %v234 = vld [vmem:[#allocation4 + $0x30] sm:$0xf]
    %v235 = vld [vmem:[#allocation4 + $0x34] sm:$0xf]
    %v236 = vld [vmem:[#allocation4 + $0x38] sm:$0xf]
    %v237 = vld [vmem:[#allocation4 + $0x3c] sm:$0xf]
    %v254 = vunpack.c.l.b16 %v222
    %v255 = vunpack.c.l.b16 %v223
    %v256 = vunpack.c.l.b16 %v224
    %v257 = vunpack.c.l.b16 %v225
    %v258 = vunpack.c.l.b16 %v226
    %v259 = vunpack.c.l.b16 %v227
    %v260 = vunpack.c.l.b16 %v228
    %v261 = vunpack.c.l.b16 %v229
    %v262 = vunpack.c.l.b16 %v230
    %v263 = vunpack.c.l.b16 %v231
    %v264 = vunpack.c.l.b16 %v232
    %v265 = vunpack.c.l.b16 %v233
    %v266 = vunpack.c.l.b16 %v234
    %v267 = vunpack.c.l.b16 %v235
    %v268 = vunpack.c.l.b16 %v236
    %v269 = vunpack.c.l.b16 %v237
    %v270 = vpack.c.b16 %v255, %v254
    %v271 = vpack.c.b16 %v257, %v256
    %v272 = vpack.c.b16 %v259, %v258
    %v273 = vpack.c.b16 %v261, %v260
    %v274 = vpack.c.b16 %v263, %v262
    %v275 = vpack.c.b16 %v265, %v264
    %v276 = vpack.c.b16 %v267, %v266
    %v277 = vpack.c.b16 %v269, %v268
    %286 = vmatprep.subr.bf16.mxu0 0
    %287 = vmatpush1.bf16.msra.mxu0 %v270
    %288 = vmatprep.subr.bf16.mxu0 0
    %289 = vmatpush1.bf16.msra.mxu0 %v271
    %290 = vmatprep.subr.bf16.mxu0 0
    %291 = vmatpush1.bf16.msra.mxu0 %v272
    %292 = vmatprep.subr.bf16.mxu0 0
    %293 = vmatpush1.bf16.msra.mxu0 %v273
    %294 = vmatprep.subr.bf16.mxu0 0
    %295 = vmatpush1.bf16.msra.mxu0 %v274
    %296 = vmatprep.subr.bf16.mxu0 0
    %297 = vmatpush1.bf16.msra.mxu0 %v275
    %298 = vmatprep.subr.bf16.mxu0 0
    %299 = vmatpush1.bf16.msra.mxu0 %v276
    %300 = vmatprep.subr.bf16.mxu0 0
    %301 = vmatpush1.bf16.msra.mxu0 %v277
    %302 = vmatprep.subr.bf16.mxu0 0
    %303 = vmatpush1.bf16.msra.mxu0 0
    %304 = vmatprep.subr.bf16.mxu0 0
    %305 = vmatpush1.bf16.msra.mxu0 0
    %306 = vmatprep.subr.bf16.mxu0 0
    %307 = vmatpush1.bf16.msra.mxu0 0
    %308 = vmatprep.subr.bf16.mxu0 0
    %309 = vmatpush1.bf16.msra.mxu0 0
    %310 = vmatprep.subr.bf16.mxu0 0
    %311 = vmatpush1.bf16.msra.mxu0 0
    %312 = vmatprep.subr.bf16.mxu0 0
    %313 = vmatpush1.bf16.msra.mxu0 0
    %314 = vmatprep.subr.bf16.mxu0 0
    %315 = vmatpush1.bf16.msra.mxu0 0
    %316 = vmatprep.subr.bf16.mxu0 0
    %317 = vmatpush1.bf16.msra.mxu0 0
    %318 = vmatprep.mubr.bf16.mxu0 0
    %319 = vmatmul.mubr.bf16.gmra.mrb[0].mxu0 %v221
    %v320 = vpop.f32.mrb[0].mxu0
    %v321 = vadd.f32 0.0, %v320
    %v322 = vpop.f32.mrb[0].mxu0
    %v323 = vpop.f32.mrb[0].mxu0
    %v324 = vpop.f32.mrb[0].mxu0
    %325 = vdwg.mxu0
    %v326 = vrot.slane %v321, 4
    %v327 = vadd.f32 %v321, %v326
    %v328 = vrot.slane %v327, 2
    %v329 = vadd.f32 %v327, %v328
    %v330 = vrot.slane %v329, 1
    %v331 = vadd.f32 %v329, %v330
    %v332 = vmul.f32 %v321, %v321
    %v333 = vrot.slane %v332, 4
    %v334 = vadd.f32 %v332, %v333
    %v335 = vrot.slane %v334, 2
    %v336 = vadd.f32 %v334, %v335
    %v337 = vrot.slane %v336, 1
    %v338 = vadd.f32 %v336, %v337
    %v339 = vmul.f32 %v331, 0.125
    %v340 = vmul.f32 %v338, 0.125
    %v341 = vmul.f32 %v339, %v339
    %v342 = vsub.f32 %v340, %v341
    %v343 = vmax.f32 %v342, 0.0
    %v344 = vadd.f32 %v343, 1e-05
    %v345 = vrsqrt.pop %v344
    %v346 = vld [vmem:[%s5] sm:$0x1]
    %v347 = vmul.f32 %v345, %v346
    %v348 = vsub.f32 %v321, %v339
    %v349 = vlaneseq
    %v350 = vshrl.u32 %v349, 7
    %v351 = vsub.s32 0, %v350
    %v352 = vrot.slane %v347, %v351
    %v353 = vmul.f32 %v348, %v352
    %v354 = vld [vmem:[%s6] sm:$0x1]
    %v356 = vlaneseq
    %v357 = vshrl.u32 %v356, 7
    %v358 = vsub.s32 0, %v357
    %v359 = vrot.slane %v354, %v358
    %v361 = vadd.f32 %v353, %v359
    %v362 = vmul.f32 %v361, 0.5
    %v363 = vtanh.pop %v362
    %v364 = vmul.f32 %v363, 0.5
    %v365 = vadd.f32 %v364, 0.5
    %v366 = vmul.f32 %v361, %v365
    %v367 = vpack.c.bf16 %v366, %v366
    %v368 = vld [vmem:[#allocation6] sm:$0xf]
    %v369 = vld [vmem:[#allocation6 + $0x4] sm:$0xf]
    %v370 = vld [vmem:[#allocation6 + $0x8] sm:$0xf]
    %v371 = vld [vmem:[#allocation6 + $0xc] sm:$0xf]
    %v372 = vld [vmem:[#allocation6 + $0x10] sm:$0xf]
    %v373 = vld [vmem:[#allocation6 + $0x14] sm:$0xf]
    %v374 = vld [vmem:[#allocation6 + $0x18] sm:$0xf]
    %v375 = vld [vmem:[#allocation6 + $0x1c] sm:$0xf]
    %v376 = vld [vmem:[#allocation6 + $0x20] sm:$0xf]
    %v377 = vld [vmem:[#allocation6 + $0x24] sm:$0xf]
    %v378 = vld [vmem:[#allocation6 + $0x28] sm:$0xf]
    %v379 = vld [vmem:[#allocation6 + $0x2c] sm:$0xf]
    %v380 = vld [vmem:[#allocation6 + $0x30] sm:$0xf]
    %v381 = vld [vmem:[#allocation6 + $0x34] sm:$0xf]
    %v382 = vld [vmem:[#allocation6 + $0x38] sm:$0xf]
    %v383 = vld [vmem:[#allocation6 + $0x3c] sm:$0xf]
    %v384 = vld [vmem:[%s8] sm:$0x1]
    %v386 = vlaneseq
    %v387 = vshrl.u32 %v386, 7
    %v388 = vsub.s32 0, %v387
    %v389 = vrot.slane %v384, %v388
    %v407 = vunpack.c.l.b16 %v368
    %v408 = vunpack.c.l.b16 %v369
    %v409 = vunpack.c.l.b16 %v370
    %v410 = vunpack.c.l.b16 %v371
    %v411 = vunpack.c.l.b16 %v372
    %v412 = vunpack.c.l.b16 %v373
    %v413 = vunpack.c.l.b16 %v374
    %v414 = vunpack.c.l.b16 %v375
    %v415 = vunpack.c.l.b16 %v376
    %v416 = vunpack.c.l.b16 %v377
    %v417 = vunpack.c.l.b16 %v378
    %v418 = vunpack.c.l.b16 %v379
    %v419 = vunpack.c.l.b16 %v380
    %v420 = vunpack.c.l.b16 %v381
    %v421 = vunpack.c.l.b16 %v382
    %v422 = vunpack.c.l.b16 %v383
    %v423 = vpack.c.b16 %v408, %v407
    %v424 = vpack.c.b16 %v410, %v409
    %v425 = vpack.c.b16 %v412, %v411
    %v426 = vpack.c.b16 %v414, %v413
    %v427 = vpack.c.b16 %v416, %v415
    %v428 = vpack.c.b16 %v418, %v417
    %v429 = vpack.c.b16 %v420, %v419
    %v430 = vpack.c.b16 %v422, %v421
    %439 = vmatprep.subr.bf16.mxu0 0
    %440 = vmatpush1.bf16.msra.mxu0 %v423
    %441 = vmatprep.subr.bf16.mxu0 0
    %442 = vmatpush1.bf16.msra.mxu0 %v424
    %443 = vmatprep.subr.bf16.mxu0 0
    %444 = vmatpush1.bf16.msra.mxu0 %v425
    %445 = vmatprep.subr.bf16.mxu0 0
    %446 = vmatpush1.bf16.msra.mxu0 %v426
    %447 = vmatprep.subr.bf16.mxu0 0
    %448 = vmatpush1.bf16.msra.mxu0 %v427
    %449 = vmatprep.subr.bf16.mxu0 0
    %450 = vmatpush1.bf16.msra.mxu0 %v428
    %451 = vmatprep.subr.bf16.mxu0 0
    %452 = vmatpush1.bf16.msra.mxu0 %v429
    %453 = vmatprep.subr.bf16.mxu0 0
    %454 = vmatpush1.bf16.msra.mxu0 %v430
    %455 = vmatprep.subr.bf16.mxu0 0
    %456 = vmatpush1.bf16.msra.mxu0 0
    %457 = vmatprep.subr.bf16.mxu0 0
    %458 = vmatpush1.bf16.msra.mxu0 0
    %459 = vmatprep.subr.bf16.mxu0 0
    %460 = vmatpush1.bf16.msra.mxu0 0
    %461 = vmatprep.subr.bf16.mxu0 0
    %462 = vmatpush1.bf16.msra.mxu0 0
    %463 = vmatprep.subr.bf16.mxu0 0
    %464 = vmatpush1.bf16.msra.mxu0 0
    %465 = vmatprep.subr.bf16.mxu0 0
    %466 = vmatpush1.bf16.msra.mxu0 0
    %467 = vmatprep.subr.bf16.mxu0 0
    %468 = vmatpush1.bf16.msra.mxu0 0
    %469 = vmatprep.subr.bf16.mxu0 0
    %470 = vmatpush1.bf16.msra.mxu0 0
    %471 = vmatprep.mubr.bf16.mxu0 0
    %472 = vmatmul.mubr.bf16.gmra.mrb[0].mxu0 %v367
    %v473 = vpop.f32.mrb[0].mxu0
    %v474 = vadd.f32 %v389, %v473
    %v475 = vpop.f32.mrb[0].mxu0
    %v476 = vpop.f32.mrb[0].mxu0
    %v477 = vpop.f32.mrb[0].mxu0
    %478 = vdwg.mxu0
    %479 = vmax.xlane.f32.xlu0 %v474
    %v480 = vpop.xlane.xlu0 %479
    %v481 = vsub.f32 %v474, %v480
    %v482 = vmul.f32 %v481, 1.442695
    %v483 = vpow.pop %v482
    %484 = vadd.xlane.f32.xlu0 %v483
    %v485 = vpop.xlane.xlu0 %484
    %v486 = vrcp.pop %v485
    %v487 = vmul.f32 %v483, %v486
    %v488 = vadd.f32 %v487, 0.01
    %489 = vst [vmem:[%s9] sm:$0xff] %v488
    // Predicated region
    $region50: #{topnet_forward.1} parent=1 // pred_check
      _
    $region51: #{topnet_forward.1} parent=1 // pred_check_branch
      %491 = sbr.rel (0) target = $region53
    $region52: #{topnet_forward.1} parent=1 // pred_region
      _
    $region53: #{topnet_forward.1} parent=1 // pred_fallthru
      _
    // Predicated region
    $region54: #{topnet_forward.1} parent=1 // pred_check
      _
    $region55: #{topnet_forward.1} parent=1 // pred_check_branch
      %493 = sbr.rel (0) target = $region57
    $region56: #{topnet_forward.1} parent=1 // pred_region
      _
    $region57: #{topnet_forward.1} parent=1 // pred_fallthru
      _
    %494 = vsyncpa [#allocation3], 1
    %495 = vsyncpa [#allocation5], 1

</llo_original>
